<compile_context>
chip_gen: v7x
topology: tpu7x:2x2x1
jax: 0.10.0
libtpu: 0.0.40
codegen_flags: <defaults>
</compile_context>

<pallas_src>
import jax
import jax.numpy as jnp
from jax import lax
from jax.experimental import pallas as pl
from jax.experimental.pallas import tpu as pltpu


def _tile_n(n, target=256):
    """Largest point-axis tile <= target that divides n (falls back to n)."""
    if n <= target:
        return n
    for t in (target, 128):
        if n % t == 0:
            return t
    return n


_COMPILER_PARAMS_2D = pltpu.CompilerParams(
    dimension_semantics=("parallel", "parallel"),
    vmem_limit_bytes=32 * 1024 * 1024,
)


# ---------------------------------------------------------------------------
# Kernel 1: pairwise (negative squared) distances, tiled over both point axes.
# pairwise[b, i, j] = 2 * x_i . x_j - ||x_i||^2 - ||x_j||^2 = -||x_i - x_j||^2
# ---------------------------------------------------------------------------
def _pdist_kernel(xr_ref, xc_ref, d_ref):
    xi = xr_ref[0].astype(jnp.float32)                                 # (C, TM)
    xj = xc_ref[0].astype(jnp.float32)                                 # (C, TN)
    # Contraction depth is only C (3..64): this matmul is store/DMA-bound, not
    # MXU-bound -- no MXU-shape tuning attempted on purpose.
    inner = lax.dot_general(xi, xj, (((0,), (0,)), ((), ())),
                            preferred_element_type=jnp.float32)        # (TM, TN)
    xx_i = jnp.sum(xi * xi, axis=0, keepdims=True)                     # (1, TM)
    xx_j = jnp.sum(xj * xj, axis=0, keepdims=True)                     # (1, TN)
    d_ref[0] = (2.0 * inner - xx_i.T - xx_j).astype(d_ref.dtype)


def pairwise_neg_sqdist(x, tile=256):
    B, C, N = x.shape
    T = _tile_n(N, tile)
    nt = N // T
    return pl.pallas_call(
        _pdist_kernel,
        out_shape=jax.ShapeDtypeStruct((B, N, N), jnp.float32),
        grid_spec=pltpu.PrefetchScalarGridSpec(
            num_scalar_prefetch=0,
            grid=(B, nt, nt),
            in_specs=[pl.BlockSpec((1, C, T), lambda b, i, j: (b, 0, i)),
                      pl.BlockSpec((1, C, T), lambda b, i, j: (b, 0, j))],
            out_specs=pl.BlockSpec((1, T, T), lambda b, i, j: (b, i, j)),
        ),
        compiler_params=pltpu.CompilerParams(
            dimension_semantics=("parallel", "parallel", "parallel"),
            vmem_limit_bytes=32 * 1024 * 1024),
    )(x, x)


# ---------------------------------------------------------------------------
# Kernel 2: per-tile partial sums for torch.std(feature - center).
# Each (b, n-tile) grid step writes its own lane-wise (1, K) partials; the
# single cross-lane reduce over the tiny partial array happens in the wrapper.
# ---------------------------------------------------------------------------
def _stats_kernel(feat_ref, x_ref, sum_ref, sq_ref):
    feat = feat_ref[0].astype(jnp.float32)        # (C, TN, K)
    center = x_ref[0].astype(jnp.float32)         # (C, TN, 1)
    diff = feat - center
    s2 = jnp.sum(diff, axis=0)                    # (TN, K)  VPU adds over C
    q2 = jnp.sum(diff * diff, axis=0)             # (TN, K)
    sum_ref[0, 0] = jnp.sum(s2, axis=0, keepdims=True)   # (1, K)
    sq_ref[0, 0] = jnp.sum(q2, axis=0, keepdims=True)    # (1, K)


def diff_partial_stats(feat_cf, x4, tile=256):
    B, C, N, K = feat_cf.shape
    T = _tile_n(N, tile)
    nt = N // T
    return pl.pallas_call(
        _stats_kernel,
        out_shape=(jax.ShapeDtypeStruct((B, nt, 1, K), jnp.float32),
                   jax.ShapeDtypeStruct((B, nt, 1, K), jnp.float32)),
        grid_spec=pltpu.PrefetchScalarGridSpec(
            num_scalar_prefetch=0,
            grid=(B, nt),
            in_specs=[pl.BlockSpec((1, C, T, K), lambda b, n: (b, 0, n, 0)),
                      pl.BlockSpec((1, C, T, 1), lambda b, n: (b, 0, n, 0))],
            out_specs=(pl.BlockSpec((1, 1, 1, K), lambda b, n: (b, n, 0, 0)),
                       pl.BlockSpec((1, 1, 1, K), lambda b, n: (b, n, 0, 0))),
        ),
        compiler_params=_COMPILER_PARAMS_2D,
    )(feat_cf, x4)


# ---------------------------------------------------------------------------
# Kernel 3: normalize, affine, and write the NCHW (B, 2C, N, K) output
# directly: first C channels = affine-normalized neighbors, last C channels =
# the repeated center point.  No concat/broadcast temporaries, no trailing
# XLA transpose pass.
# ---------------------------------------------------------------------------
def _affine_concat_kernel(std_ref, feat_ref, x_ref, alpha_ref, beta_ref, out_ref):
    C = feat_ref.shape[1]
    inv = 1.0 / (std_ref[0, 0] + 1e-5)
    feat = feat_ref[0].astype(jnp.float32)        # (C, TN, K)
    center = x_ref[0].astype(jnp.float32)         # (C, TN, 1)
    f = (feat - center) * inv
    f = alpha_ref[...] * f + beta_ref[...]        # (C,1,1) broadcast
    out_ref[0, :C, :, :] = f.astype(out_ref.dtype)
    out_ref[0, C:, :, :] = jnp.broadcast_to(center, feat.shape).astype(out_ref.dtype)


def affine_concat_nchw(feat_cf, x4, alpha3, beta3, std_arr, tile=256):
    B, C, N, K = feat_cf.shape
    T = _tile_n(N, tile)
    nt = N // T
    return pl.pallas_call(
        _affine_concat_kernel,
        out_shape=jax.ShapeDtypeStruct((B, 2 * C, N, K), jnp.float32),
        grid_spec=pltpu.PrefetchScalarGridSpec(
            num_scalar_prefetch=0,
            grid=(B, nt),
            in_specs=[pl.BlockSpec(memory_space=pltpu.MemorySpace.SMEM),   # std (1,1)
                      pl.BlockSpec((1, C, T, K), lambda b, n: (b, 0, n, 0)),
                      pl.BlockSpec((1, C, T, 1), lambda b, n: (b, 0, n, 0)),
                      pl.BlockSpec((C, 1, 1), lambda b, n: (0, 0, 0)),
                      pl.BlockSpec((C, 1, 1), lambda b, n: (0, 0, 0))],
            out_specs=pl.BlockSpec((1, 2 * C, T, K), lambda b, n: (b, 0, n, 0)),
        ),
        compiler_params=_COMPILER_PARAMS_2D,
    )(std_arr, feat_cf, x4, alpha3, beta3)


# ---------------------------------------------------------------------------
# Full forward (matches get_graph_feature.forward semantics, returns NCHW)
# ---------------------------------------------------------------------------
def get_graph_feature(x, affine_alpha, affine_beta, k):
    B, C, N = x.shape

    # k-NN: pairwise distances in Pallas (tiled), selection via top_k.
    d = pairwise_neg_sqdist(x)                          # (B, N, N)
    # TODO(synk): top-k selection has no clean Pallas primitive; lax.top_k in XLA.
    _, idx = lax.top_k(d, k)                            # (B, N, k)

    # Channel-first neighbor gather -> (B, C, N, k); this layout lets kernel 3
    # emit the final NCHW output without any transpose (in-kernel or XLA).
    # TODO(synk): fusing this data-dependent gather into the Pallas kernels
    # (scalar-prefetched idx + per-row DMA gather) would remove one full HBM
    # pass over the feature tensor.
    feat_cf = jax.vmap(lambda xb, ib: xb[:, ib])(x, idx)   # (B, C, N, k)
    x4 = x[:, :, :, None]                                  # (B, C, N, 1)

    # Global std of (feature - center), unbiased like torch.std (ddof=1),
    # computed from per-tile lane-wise partial sums.
    s_part, sq_part = diff_partial_stats(feat_cf, x4)
    total_sum = jnp.sum(s_part)
    total_sq = jnp.sum(sq_part)
    M = B * N * k * C
    mean = total_sum / M
    # NOTE: single-pass sum/sum-of-squares; acceptable here because diff is
    # already centered (mean ~ 0), but a pairwise/Welford combine would be
    # more robust at very large M.
    var = (total_sq - M * mean * mean) / (M - 1)
    std = jnp.sqrt(jnp.maximum(var, 0.0))
    std_arr = jnp.reshape(std, (1, 1)).astype(jnp.float32)

    alpha3 = affine_alpha.reshape(C, 1, 1).astype(jnp.float32)
    beta3 = affine_beta.reshape(C, 1, 1).astype(jnp.float32)
    return affine_concat_nchw(feat_cf, x4, alpha3, beta3, std_arr)  # (B, 2C, N, k)


# ---------------------------------------------------------------------------
# Pure-JAX reference (mirrors the PyTorch module) for a correctness check.
# ---------------------------------------------------------------------------
def _reference(x, affine_alpha, affine_beta, k):
    xt = jnp.transpose(x, (0, 2, 1))                       # (B, N, C)
    inner = -2.0 * jnp.einsum('bcn,bcm->bnm', x, x)
    xx = jnp.sum(x * x, axis=1, keepdims=True)             # (B, 1, N)
    pd = -xx - inner - jnp.transpose(xx, (0, 2, 1))
    _, idx = lax.top_k(pd, k)
    feat = jax.vmap(lambda xb, ib: xb[ib])(xt, idx)        # (B, N, k, C)
    mean = xt[:, :, None, :]
    std = jnp.std(feat - mean, ddof=1)
    feat = (feat - mean) / (std + 1e-5)
    feat = affine_alpha * feat + affine_beta
    xrep = jnp.broadcast_to(mean, feat.shape)
    out = jnp.concatenate([feat, xrep], axis=-1)           # (B, N, k, 2C)
    return jnp.transpose(out, (0, 3, 1, 2))                # (B, 2C, N, k)


if __name__ == "__main__":
    key = jax.random.PRNGKey(0)
    B, C, N, K = 2, 4, 16, 4
    x = jax.random.normal(key, (B, C, N), dtype=jnp.float32)

    # Deterministic parameter init, exactly as in the module's __init__.
    affine_alpha = jnp.ones((1, 1, 1, C), dtype=jnp.float32)
    affine_beta = jnp.zeros((1, 1, 1, C), dtype=jnp.float32)

    out = get_graph_feature(x, affine_alpha, affine_beta, K)
    out = jax.block_until_ready(out)
    assert out.shape == (B, 2 * C, N, K), out.shape
    assert bool(jnp.all(jnp.isfinite(out)))

    ref = _reference(x, affine_alpha, affine_beta, K)
    assert bool(jnp.allclose(out, ref, atol=2e-3, rtol=2e-3)), \
        float(jnp.max(jnp.abs(out - ref)))
    print("KERNEL_OK")
</pallas_src>

<mosaic_0001>
module attributes {stable_mosaic.version = 11 : i64} {
  func.func @_pdist_kernel(%arg0: i32, %arg1: i32, %arg2: i32, %arg3: memref<1x4x16xf32, #tpu.memory_space<vmem>>, %arg4: memref<1x4x16xf32, #tpu.memory_space<vmem>>, %arg5: memref<1x16x16xf32, #tpu.memory_space<vmem>>) attributes {dimension_semantics = [#tpu.dimension_semantics<parallel>, #tpu.dimension_semantics<parallel>, #tpu.dimension_semantics<parallel>], iteration_bounds = array<i64: 2, 1, 1>, scalar_prefetch = 0 : i64, scratch_operands = 0 : i64, tpu.core_type = #tpu.core_type<tc>, window_params = [{transform_indices = @transform_0, window_bounds = array<i64: 1, 4, 16>}, {transform_indices = @transform_1, window_bounds = array<i64: 1, 4, 16>}, {transform_indices = @transform_2, window_bounds = array<i64: 1, 16, 16>}]} {
    %c0 = arith.constant 0 : index
    %c0_0 = arith.constant 0 : index
    %c0_1 = arith.constant 0 : index
    %0 = vector.load %arg3[%c0, %c0_0, %c0_1] : memref<1x4x16xf32, #tpu.memory_space<vmem>>, vector<1x4x16xf32>
    %1 = vector.shape_cast %0 : vector<1x4x16xf32> to vector<4x16xf32>
    %c0_2 = arith.constant 0 : index
    %c0_3 = arith.constant 0 : index
    %c0_4 = arith.constant 0 : index
    %2 = vector.load %arg4[%c0_2, %c0_3, %c0_4] : memref<1x4x16xf32, #tpu.memory_space<vmem>>, vector<1x4x16xf32>
    %3 = vector.shape_cast %2 : vector<1x4x16xf32> to vector<4x16xf32>
    %cst = arith.constant dense<0.000000e+00> : vector<16x16xf32>
    %4 = tpu.matmul %1, %3, %cst {dimension_numbers = #tpu.dot_dimension_numbers<[0], [0], [1], [1], [0, 1, 1, 1], [], []>} : vector<4x16xf32>, vector<4x16xf32>, vector<16x16xf32> -> vector<16x16xf32>
    %5 = arith.mulf %1, %1 : vector<4x16xf32>
    %cst_5 = arith.constant dense<0.000000e+00> : vector<16xf32>
    %6 = vector.multi_reduction <add>, %5, %cst_5 [0] : vector<4x16xf32> to vector<16xf32>
    %7 = vector.shape_cast %6 : vector<16xf32> to vector<1x16xf32>
    %8 = arith.mulf %3, %3 : vector<4x16xf32>
    %cst_6 = arith.constant dense<0.000000e+00> : vector<16xf32>
    %9 = vector.multi_reduction <add>, %8, %cst_6 [0] : vector<4x16xf32> to vector<16xf32>
    %10 = vector.shape_cast %9 : vector<16xf32> to vector<1x16xf32>
    %cst_7 = arith.constant 2.000000e+00 : f32
    %11 = vector.broadcast %cst_7 : f32 to vector<16x16xf32>
    %12 = arith.mulf %11, %4 : vector<16x16xf32>
    %13 = tpu.transpose %7, [1, 0] : vector<1x16xf32> -> vector<16x1xf32>
    %14 = vector.broadcast %13 : vector<16x1xf32> to vector<16x16xf32>
    %15 = arith.subf %12, %14 : vector<16x16xf32>
    %16 = vector.broadcast %10 : vector<1x16xf32> to vector<16x16xf32>
    %17 = arith.subf %15, %16 : vector<16x16xf32>
    %c0_8 = arith.constant 0 : index
    %c0_9 = arith.constant 0 : index
    %c0_10 = arith.constant 0 : index
    %18 = vector.load %arg5[%c0_8, %c0_9, %c0_10] : memref<1x16x16xf32, #tpu.memory_space<vmem>>, vector<1x16x16xf32>
    %19 = vector.shape_cast %18 : vector<1x16x16xf32> to vector<16x16xf32>
    %20 = vector.shape_cast %17 : vector<16x16xf32> to vector<1x16x16xf32>
    tpu.vector_store %arg5[%c0_8, %c0_9, %c0_10], %20 {strides = array<i32>} : memref<1x16x16xf32, #tpu.memory_space<vmem>>, vector<1x16x16xf32>,
    return
  }
  func.func @transform_0(%arg0: i32, %arg1: i32, %arg2: i32) -> (i32, i32, i32) {
    %c0_i32 = arith.constant 0 : i32
    %c0_i32_0 = arith.constant 0 : i32
    return %arg0, %c0_i32, %arg1 : i32, i32, i32
  }
  func.func @transform_1(%arg0: i32, %arg1: i32, %arg2: i32) -> (i32, i32, i32) {
    %c0_i32 = arith.constant 0 : i32
    %c0_i32_0 = arith.constant 0 : i32
    return %arg0, %c0_i32, %arg2 : i32, i32, i32
  }
  func.func @transform_2(%arg0: i32, %arg1: i32, %arg2: i32) -> (i32, i32, i32) {
    %c0_i32 = arith.constant 0 : i32
    return %arg0, %arg1, %arg2 : i32, i32, i32
  }
}

</mosaic_0001>

<llo_original>
// kernel: tpu_custom_call.1
$region0: #{tpu_custom_call.1}
  #allocation0 [shape = 'u32[]', space=smem, size = 0x4, offset = 0x4, fixed_abs, tag = 'smem constant byte address 0x4 - core index']
  #allocation1 [shape = 'u32[144,128]{1,0:T(1,128)}', space=vmem, size = 0x12000, scoped, tag = 'internal scratch']
  %s0 = inlined_call_operand.hbm [shape: f32[2,4,16], index: 0, kind: input, shape index: {}]
  %s1 = inlined_call_operand.hbm [shape: f32[2,4,16], index: 1, kind: input, shape index: {}]
  %s2 = inlined_call_operand.hbm [shape: f32[2,16,16], index: 2, kind: output, shape index: {}]
  %s3 = sld [smem:[#allocation0]]
  $region49: #{tpu_custom_call.1} parent=0
    _
  %s5 = ssub.s32 1, %s3
  %s6 = scalar_select 0, %s5, %s3
  $region1: #{tpu_custom_call.1} parent=0
    #allocation2 [shape = 'u8[4096]{0}', space=vmem, size = 0x1000, scoped, tag = 'input window, operand 0']
    #allocation3 [shape = 's32[2]{0}', space=sflag, size = 0x8, scoped, tag = 'scoped memory for tpu_custom_call.1']
    #allocation4 [shape = 's32[2]{0}', space=sflag, size = 0x8, scoped, tag = 'scoped memory for tpu_custom_call.1']
    #allocation5 [shape = 'u8[4096]{0}', space=vmem, size = 0x1000, scoped, tag = 'input window, operand 1']
    #allocation6 [shape = 's32[2]{0}', space=sflag, size = 0x8, scoped, tag = 'scoped memory for tpu_custom_call.1']
    #allocation7 [shape = 'u8[16384]{0}', space=vmem, size = 0x4000, scoped, tag = 'output window, operand 0']
    %7 = vsyncpa [#allocation3], 0
    %s8 = scalar_lea.sflag [#allocation3], 1
    %9 = vsyncpa %s8, 0
    %10 = vsyncpa [#allocation6], 0
    %s11 = scalar_lea.sflag [#allocation6], 1
    %12 = vsyncpa %s11, 0
    %13 = vsyncpa [#allocation4], 0
    %s14 = scalar_lea.sflag [#allocation4], 1
    %15 = vsyncpa %s14, 0
    loop: start=0, step=1, limit=4
    $region2: #{tpu_custom_call.1} parent=1 // loop_pre_header
      _
    $region3: #{tpu_custom_call.1} parent=1 // loop_header
      %s17 = sphi 0, %s21
      %p18 = scmp.ge.s32.totalorder %s17, 4
      %s24 = sphi 0, %s43
      %s25 = sphi 0, %s39
      %s26 = sphi 0, %s35
      %s27 = sphi 0, %s24
      %s28 = sphi 0, %s25
      %s29 = sphi 0, %s26
      %s30 = sphi 0, %s27
      %s31 = sphi 0, %s28
      %s32 = sphi 0, %s29
      %s48 = sphi 0, %s50
      %s51 = sphi 0, %s48
      %s52 = sphi 0, %s51
      %s68 = sphi 0, %s52
      %s76 = sphi 0, %s78
      %s79 = sphi 0, %s76
      %s80 = sphi 0, %s79
      %s96 = sphi 0, %s80
      %s106 = sphi 0, %s108
      %s109 = sphi 0, %s106
      %s110 = sphi 0, %s109
      %s126 = sphi 0, %s110
    $region4: #{tpu_custom_call.1} parent=1 // loop_header_branch
      %20 = sbr.rel (%p18) target = $region8
    $region5: #{tpu_custom_call.1} parent=1 // loop_body
      %s22 = ssub.s32 %s17, 1
      %s23 = ssub.s32 %s17, 2
      %s33 = sadd.s32 1, %s26
      %p34 = scmp.ge.s32.totalorder %s33, 1
      %s35 = scalar_select %p34, 0, %s33
      %s36 = sadd.s32 1, %s25
      %s37 = scalar_select %p34, %s36, %s25
      %p38 = scmp.ge.s32.totalorder %s37, 1
      %s39 = scalar_select %p38, 0, %s37
      %s40 = sadd.s32 1, %s24
      %s41 = scalar_select %p38, %s40, %s24
      %p42 = scmp.ge.s32.totalorder %s41, 2
      %s43 = scalar_select %p42, 0, %s41
      %s44 = ssub.s32 %s24, %s43
      %s45 = ssub.s32 %s25, %s39
      %s46 = sor.u32 %s44, %s45
      %p47 = scmp.eq.s32.totalorder %s46, 0
      %s49 = sadd.s32 %s48, 1
      %s50 = scalar_select %p47, %s48, %s49
      %p53 = pneg %p47
      %p54 = scmp.eq.s32.totalorder %s17, 1
      %p55 = por %p53, %p54
      %p56 = scmp.ne.s32.totalorder %s48, %s51
      %p57 = scmp.eq.s32.totalorder %s17, 0
      %p58 = por %p56, %p57
      %p59 = scmp.ne.s32.totalorder %s48, %s51
      %p60 = scmp.eq.s32.totalorder %s22, 1
      %p61 = por %p59, %p60
      %p62 = scmp.ne.s32.totalorder %s51, %s52
      %p63 = scmp.eq.s32.totalorder %s22, 0
      %p64 = por %p62, %p63
      %p65 = scmp.ne.s32.totalorder %s51, %s52
      %p66 = scmp.eq.s32.totalorder %s23, 1
      %p67 = por %p65, %p66
      %p69 = scmp.ne.s32.totalorder %s52, %s68
      %p70 = scmp.eq.s32.totalorder %s23, 0
      %p71 = por %p69, %p70
      %s72 = ssub.s32 %s24, %s43
      %s73 = ssub.s32 %s26, %s35
      %s74 = sor.u32 %s72, %s73
      %p75 = scmp.eq.s32.totalorder %s74, 0
      %s77 = sadd.s32 %s76, 1
      %s78 = scalar_select %p75, %s76, %s77
      %p81 = pneg %p75
      %p82 = scmp.eq.s32.totalorder %s17, 1
      %p83 = por %p81, %p82
      %p84 = scmp.ne.s32.totalorder %s76, %s79
      %p85 = scmp.eq.s32.totalorder %s17, 0
      %p86 = por %p84, %p85
      %p87 = scmp.ne.s32.totalorder %s76, %s79
      %p88 = scmp.eq.s32.totalorder %s22, 1
      %p89 = por %p87, %p88
      %p90 = scmp.ne.s32.totalorder %s79, %s80
      %p91 = scmp.eq.s32.totalorder %s22, 0
      %p92 = por %p90, %p91
      %p93 = scmp.ne.s32.totalorder %s79, %s80
      %p94 = scmp.eq.s32.totalorder %s23, 1
      %p95 = por %p93, %p94
      %p97 = scmp.ne.s32.totalorder %s80, %s96
      %p98 = scmp.eq.s32.totalorder %s23, 0
      %p99 = por %p97, %p98
      %s100 = ssub.s32 %s24, %s43
      %s101 = ssub.s32 %s25, %s39
      %s102 = sor.u32 %s100, %s101
      %s103 = ssub.s32 %s26, %s35
      %s104 = sor.u32 %s102, %s103
      %p105 = scmp.eq.s32.totalorder %s104, 0
      %s107 = sadd.s32 %s106, 1
      %s108 = scalar_select %p105, %s106, %s107
      %p111 = pneg %p105
      %p112 = scmp.eq.s32.totalorder %s17, 1
      %p113 = por %p111, %p112
      %p114 = scmp.ne.s32.totalorder %s106, %s109
      %p115 = scmp.eq.s32.totalorder %s17, 0
      %p116 = por %p114, %p115
      %p117 = scmp.ne.s32.totalorder %s106, %s109
      %p118 = scmp.eq.s32.totalorder %s22, 1
      %p119 = por %p117, %p118
      %p120 = scmp.ne.s32.totalorder %s109, %s110
      %p121 = scmp.eq.s32.totalorder %s22, 0
      %p122 = por %p120, %p121
      %p123 = scmp.ne.s32.totalorder %s109, %s110
      %p124 = scmp.eq.s32.totalorder %s23, 1
      %p125 = por %p123, %p124
      %p127 = scmp.ne.s32.totalorder %s110, %s126
      %p128 = scmp.eq.s32.totalorder %s23, 0
      %p129 = por %p127, %p128
      %p130 = scmp.le.s32.totalorder 1, %s17
      %p131 = scmp.lt.s32.totalorder %s17, 3
      %p132 = pnand %p130, %p131
      %p133 = pneg %p132
      // Predicated region
      $region9: #{tpu_custom_call.1} parent=5 // pred_check
        _
      $region10: #{tpu_custom_call.1} parent=5 // pred_check_branch
        %135 = sbr.rel (%p132) target = $region12
      $region11: #{tpu_custom_call.1} parent=5 // pred_region
        %s136 = ssub.s32 %s17, 1
      $region12: #{tpu_custom_call.1} parent=5 // pred_fallthru
        _
      %p137 = scmp.lt.s32.totalorder %s17, 2
      // Predicated region
      $region13: #{tpu_custom_call.1} parent=5 // pred_check
        %p138 = pneg %p137
      $region14: #{tpu_custom_call.1} parent=5 // pred_check_branch
        %140 = sbr.rel (%p138) target = $region16
      $region15: #{tpu_custom_call.1} parent=5 // pred_region
        // Predicated region
        $region17: #{tpu_custom_call.1} parent=15 // pred_check
          %p141 = pneg %p58
        $region18: #{tpu_custom_call.1} parent=15 // pred_check_branch
          %143 = sbr.rel (%p141) target = $region20
        $region19: #{tpu_custom_call.1} parent=15 // pred_region
          %s144 = sand.u32 %s48, 1
          %s145 = scalar_lea.sflag [#allocation3], %s144
          %s146 = sand.u32 %s48, 1
          %s147 = smul.addr %s146, 4
          %s148 = scalar_lea.vmem [#allocation2], %s147
          %s150 = ssub.s32 64, 64
          %151 = vsyncadd %s145, %s150
          %s152 = sadd.s32 %s25, %s24
          %s153 = smul.addr %s152, 64
          %s154 = scalar_lea.hbm %s0, %s153
          %s156 = sshll.u32 %s148, 4
          %s157 = int_to_ptr.vmem [resolvable:$true] %s156
          %159 = dma.hbm_to_vmem [thread:$0]  %s154, 64, %s157, %s145
        $region20: #{tpu_custom_call.1} parent=15 // pred_fallthru
          _
        // Predicated region
        $region21: #{tpu_custom_call.1} parent=15 // pred_check
          %p160 = pneg %p86
        $region22: #{tpu_custom_call.1} parent=15 // pred_check_branch
          %162 = sbr.rel (%p160) target = $region24
        $region23: #{tpu_custom_call.1} parent=15 // pred_region
          %s163 = sand.u32 %s76, 1
          %s164 = scalar_lea.sflag [#allocation6], %s163
          %s165 = sand.u32 %s76, 1
          %s166 = smul.addr %s165, 4
          %s167 = scalar_lea.vmem [#allocation5], %s166
          %s169 = ssub.s32 64, 64
          %170 = vsyncadd %s164, %s169
          %s171 = sadd.s32 %s26, %s24
          %s172 = smul.addr %s171, 64
          %s173 = scalar_lea.hbm %s1, %s172
          %s175 = sshll.u32 %s167, 4
          %s176 = int_to_ptr.vmem [resolvable:$true] %s175
          %178 = dma.hbm_to_vmem [thread:$0]  %s173, 64, %s176, %s164
        $region24: #{tpu_custom_call.1} parent=15 // pred_fallthru
          _
      $region16: #{tpu_custom_call.1} parent=5 // pred_fallthru
        _
      %p179 = scmp.le.s32.totalorder 1, %s17
      %p180 = scmp.lt.s32.totalorder %s17, 3
      %p181 = pnand %p179, %p180
      %p182 = pneg %p181
      // Predicated region
      $region25: #{tpu_custom_call.1} parent=5 // pred_check
        _
      $region26: #{tpu_custom_call.1} parent=5 // pred_check_branch
        %184 = sbr.rel (%p181) target = $region28
      $region27: #{tpu_custom_call.1} parent=5 // pred_region
        %s185 = ssub.s32 %s17, 1
        %s186 = sand.u32 %s51, 1
        %s187 = scalar_lea.sflag [#allocation3], %s186
        %s188 = sand.u32 %s51, 1
        %s189 = smul.addr %s188, 4
        %s190 = scalar_lea.vmem [#allocation2], %s189
        // Predicated region
        $region29: #{tpu_custom_call.1} parent=27 // pred_check
          %p191 = pneg %p64
        $region30: #{tpu_custom_call.1} parent=27 // pred_check_branch
          %193 = sbr.rel (%p191) target = $region32
        $region31: #{tpu_custom_call.1} parent=27 // pred_region
          %194 = dma.done %s187, 64
        $region32: #{tpu_custom_call.1} parent=27 // pred_fallthru
          _
        %s195 = sand.u32 %s79, 1
        %s196 = scalar_lea.sflag [#allocation6], %s195
        %s197 = sand.u32 %s79, 1
        %s198 = smul.addr %s197, 4
        %s199 = scalar_lea.vmem [#allocation5], %s198
        // Predicated region
        $region33: #{tpu_custom_call.1} parent=27 // pred_check
          %p200 = pneg %p92
        $region34: #{tpu_custom_call.1} parent=27 // pred_check_branch
          %202 = sbr.rel (%p200) target = $region36
        $region35: #{tpu_custom_call.1} parent=27 // pred_region
          %203 = dma.done %s196, 64
        $region36: #{tpu_custom_call.1} parent=27 // pred_fallthru
          _
        %s204 = sand.u32 %s51, 1
        %s205 = scalar_lea.sflag [#allocation3], %s204
        %s206 = sand.u32 %s51, 1
        %s207 = smul.addr %s206, 4
        %s208 = scalar_lea.vmem [#allocation2], %s207
        %p209 = pneg %p64
        %p210 = pneg %p61
        %s211 = sand.u32 %s79, 1
        %s212 = scalar_lea.sflag [#allocation6], %s211
        %s213 = sand.u32 %s79, 1
        %s214 = smul.addr %s213, 4
        %s215 = scalar_lea.vmem [#allocation5], %s214
        %p216 = pneg %p92
        %p217 = pneg %p89
        %p218 = pneg %p122
        %p219 = pneg %p119
        %s220 = sand.u32 %s109, 1
        %s221 = scalar_lea.sflag [#allocation4], %s220
        %s222 = sand.u32 %s109, 1
        %s223 = smul.addr %s222, 16
        %s224 = scalar_lea.vmem [#allocation7], %s223
        %s225 = smul.u32 2, %s28
        %v226 = vld [vmem:[%s190] sm:$0xf]
        %v227 = vld [vmem:[%s199] sm:$0xf]
        %228 = vxpose.xlu0.b32.start [1/16] %v226, 128
        %229 = vxpose.xlu0.b32.cont [2/16] 0.0, 128
        %230 = vxpose.xlu0.b32.cont [3/16] 0.0, 128
        %231 = vxpose.xlu0.b32.cont [4/16] 0.0, 128
        %232 = vxpose.xlu0.b32.cont [5/16] 0.0, 128
        %233 = vxpose.xlu0.b32.cont [6/16] 0.0, 128
        %234 = vxpose.xlu0.b32.cont [7/16] 0.0, 128
        %235 = vxpose.xlu0.b32.cont [8/16] 0.0, 128
        %236 = vxpose.xlu0.b32.cont [9/16] 0.0, 128
        %237 = vxpose.xlu0.b32.cont [10/16] 0.0, 128
        %238 = vxpose.xlu0.b32.cont [11/16] 0.0, 128
        %239 = vxpose.xlu0.b32.cont [12/16] 0.0, 128
        %240 = vxpose.xlu0.b32.cont [13/16] 0.0, 128
        %241 = vxpose.xlu0.b32.cont [14/16] 0.0, 128
        %242 = vxpose.xlu0.b32.cont [15/16] 0.0, 128
        %243 = vxpose.xlu0.b32.end [16/16] 0.0, 128
        %v244 = vpop.trf.xlu0
        %v245 = vpop.trf.xlu0
        %v246 = vpop.trf.xlu0
        %v247 = vpop.trf.xlu0
        %v248 = vpop.trf.xlu0
        %v249 = vpop.trf.xlu0
        %v250 = vpop.trf.xlu0
        %v251 = vpop.trf.xlu0
        %v252 = vpop.trf.xlu0
        %v253 = vpop.trf.xlu0
        %v254 = vpop.trf.xlu0
        %v255 = vpop.trf.xlu0
        %v256 = vpop.trf.xlu0
        %v257 = vpop.trf.xlu0
        %v258 = vpop.trf.xlu0
        %v259 = vpop.trf.xlu0
        %vm260 = vcmask 31744
        %v262 = vsel %vm260, %v244, 0
        %v265 = vsel %vm260, %v245, 0
        %vm267 = vcmask 1043456
        %v269 = vsel %vm267, %v227, 0
        %271 = vmatprep.subr.mxu0 0.0
        %272 = vmatpush1.msra.mxu0 %v269
        %273 = vmatprep.subr.mxu0 0.0
        %274 = vmatpush1.msra.mxu0 0.0
        %275 = vmatprep.subr.mxu0 0.0
        %276 = vmatpush1.msra.mxu0 0.0
        %277 = vmatprep.subr.mxu0 0.0
        %278 = vmatpush1.msra.mxu0 0.0
        %279 = vmatprep.subr.mxu0 0.0
        %280 = vmatpush1.msra.mxu0 0.0
        %281 = vmatprep.subr.mxu0 0.0
        %282 = vmatpush1.msra.mxu0 0.0
        %283 = vmatprep.subr.mxu0 0.0
        %284 = vmatpush1.msra.mxu0 0.0
        %285 = vmatprep.subr.mxu0 0.0
        %286 = vmatpush1.msra.mxu0 0.0
        %287 = vmatprep.subr.mxu0 0.0
        %288 = vmatpush1.msra.mxu0 0.0
        %289 = vmatprep.subr.mxu0 0.0
        %290 = vmatpush1.msra.mxu0 0.0
        %291 = vmatprep.subr.mxu0 0.0
        %292 = vmatpush1.msra.mxu0 0.0
        %293 = vmatprep.subr.mxu0 0.0
        %294 = vmatpush1.msra.mxu0 0.0
        %295 = vmatprep.subr.mxu0 0.0
        %296 = vmatpush1.msra.mxu0 0.0
        %297 = vmatprep.subr.mxu0 0.0
        %298 = vmatpush1.msra.mxu0 0.0
        %299 = vmatprep.subr.mxu0 0.0
        %300 = vmatpush1.msra.mxu0 0.0
        %301 = vmatprep.subr.mxu0 0.0
        %302 = vmatpush1.msra.mxu0 0.0
        %303 = vmatprep.subr.mxu0 0.0
        %304 = vmatpush1.msra.mxu0 0.0
        %305 = vmatprep.subr.mxu0 0.0
        %306 = vmatpush1.msra.mxu0 0.0
        %307 = vmatprep.subr.mxu0 0.0
        %308 = vmatpush1.msra.mxu0 0.0
        %309 = vmatprep.subr.mxu0 0.0
        %310 = vmatpush1.msra.mxu0 0.0
        %311 = vmatprep.subr.mxu0 0.0
        %312 = vmatpush1.msra.mxu0 0.0
        %313 = vmatprep.subr.mxu0 0.0
        %314 = vmatpush1.msra.mxu0 0.0
        %315 = vmatprep.subr.mxu0 0.0
        %316 = vmatpush1.msra.mxu0 0.0
        %317 = vmatprep.subr.mxu0 0.0
        %318 = vmatpush1.msra.mxu0 0.0
        %319 = vmatprep.subr.mxu0 0.0
        %320 = vmatpush1.msra.mxu0 0.0
        %321 = vmatprep.subr.mxu0 0.0
        %322 = vmatpush1.msra.mxu0 0.0
        %323 = vmatprep.subr.mxu0 0.0
        %324 = vmatpush1.msra.mxu0 0.0
        %325 = vmatprep.subr.mxu0 0.0
        %326 = vmatpush1.msra.mxu0 0.0
        %327 = vmatprep.subr.mxu0 0.0
        %328 = vmatpush1.msra.mxu0 0.0
        %329 = vmatprep.subr.mxu0 0.0
        %330 = vmatpush1.msra.mxu0 0.0
        %331 = vmatprep.subr.mxu0 0.0
        %332 = vmatpush1.msra.mxu0 0.0
        %333 = vmatprep.subr.mxu0 0.0
        %334 = vmatpush1.msra.mxu0 0.0
        %335 = vmatprep.mubr.f32.mxu0 0.0
        %336 = vmatmul.mubr.f32.gmra.mrb[0].mxu0 %v262
        %v337 = vpop.f32.mrb[0].mxu0
        %v338 = vadd.f32 0.0, %v337
        %v339 = vpop.f32.mrb[0].mxu0
        %340 = vmatprep.mubr.f32.mxu0 0.0
        %341 = vmatmul.mubr.f32.gmra.mrb[0].mxu0 %v265
        %v342 = vpop.f32.mrb[0].mxu0
        %v343 = vadd.f32 0.0, %v342
        %v344 = vpop.f32.mrb[0].mxu0
        %345 = vdwg.mxu0
        %v346 = vmul.f32 %v226, %v226
        %vm347 = vcmask 125952
        %v348 = vsel %vm347, %v346, 0.0
        %v349 = vrot.slane %v348, 4
        %v350 = vadd.f32 %v348, %v349
        %v351 = vrot.slane %v350, 2
        %v352 = vadd.f32 %v350, %v351
        %v353 = vrot.slane %v352, 1
        %v354 = vadd.f32 %v352, %v353
        %v355 = vmul.f32 %v227, %v227
        %v356 = vsel %vm347, %v355, 0.0
        %v357 = vrot.slane %v356, 4
        %v358 = vadd.f32 %v356, %v357
        %v359 = vrot.slane %v358, 2
        %v360 = vadd.f32 %v358, %v359
        %v361 = vrot.slane %v360, 1
        %v362 = vadd.f32 %v360, %v361
        %v363 = vmul.f32 %v338, 2.0
        %v364 = vmul.f32 %v343, 2.0
        %365 = vxpose.xlu0.b32.start [1/16] %v354, 128
        %366 = vxpose.xlu0.b32.cont [2/16] 0.0, 128
        %367 = vxpose.xlu0.b32.cont [3/16] 0.0, 128
        %368 = vxpose.xlu0.b32.cont [4/16] 0.0, 128
        %369 = vxpose.xlu0.b32.cont [5/16] 0.0, 128
        %370 = vxpose.xlu0.b32.cont [6/16] 0.0, 128
        %371 = vxpose.xlu0.b32.cont [7/16] 0.0, 128
        %372 = vxpose.xlu0.b32.cont [8/16] 0.0, 128
        %373 = vxpose.xlu0.b32.cont [9/16] 0.0, 128
        %374 = vxpose.xlu0.b32.cont [10/16] 0.0, 128
        %375 = vxpose.xlu0.b32.cont [11/16] 0.0, 128
        %376 = vxpose.xlu0.b32.cont [12/16] 0.0, 128
        %377 = vxpose.xlu0.b32.cont [13/16] 0.0, 128
        %378 = vxpose.xlu0.b32.cont [14/16] 0.0, 128
        %379 = vxpose.xlu0.b32.cont [15/16] 0.0, 128
        %380 = vxpose.xlu0.b32.end [16/16] 0.0, 128
        %v381 = vpop.trf.xlu0
        %v382 = vpop.trf.xlu0
        %v383 = vpop.trf.xlu0
        %v384 = vpop.trf.xlu0
        %v385 = vpop.trf.xlu0
        %v386 = vpop.trf.xlu0
        %v387 = vpop.trf.xlu0
        %v388 = vpop.trf.xlu0
        %v389 = vpop.trf.xlu0
        %v390 = vpop.trf.xlu0
        %v391 = vpop.trf.xlu0
        %v392 = vpop.trf.xlu0
        %v393 = vpop.trf.xlu0
        %v394 = vpop.trf.xlu0
        %v395 = vpop.trf.xlu0
        %v396 = vpop.trf.xlu0
        %398 = vset.pattern.permute.xlu0 0
        %399 = vperm.xlu0 %398, %v381
        %v400 = vpop.permute.xlu0 %399
        %403 = vset.pattern.permute.xlu0 0
        %404 = vperm.xlu0 %403, %v382
        %v405 = vpop.permute.xlu0 %404
        %v407 = vsub.f32 %v363, %v400
        %v408 = vsub.f32 %v364, %v405
        %v409 = vsub.f32 %v407, %v362
        %v410 = vsub.f32 %v408, %v362
        %vm411 = vcmask 130048
        %412 = vst.msk [vmem:[%s224] sm:$0xff] %vm411, %v409
        %413 = vst.msk [vmem:[%s224 + $0x8] sm:$0xff] %vm411, %v410
        %s414 = sand.u32 %s109, 1
        %s415 = scalar_lea.sflag [#allocation4], %s414
        %s416 = sand.u32 %s109, 1
        %s417 = smul.addr %s416, 16
        %s418 = scalar_lea.vmem [#allocation7], %s417
        // Predicated region
        $region37: #{tpu_custom_call.1} parent=27 // pred_check
          %p419 = pneg %p119
        $region38: #{tpu_custom_call.1} parent=27 // pred_check_branch
          %421 = sbr.rel (%p419) target = $region40
        $region39: #{tpu_custom_call.1} parent=27 // pred_region
          %s422 = smul.u32 2, %s28
          %s424 = ssub.s32 256, 256
          %425 = vsyncadd %s415, %s424
          %s426 = sadd.s32 %s29, %s422
          %s427 = smul.addr %s27, 2
          %s428 = sadd.s32 %s426, %s427
          %s429 = smul.addr %s428, 128
          %s430 = scalar_lea.hbm %s2, %s429
          %s431 = sshll.u32 %s418, 4
          %s432 = int_to_ptr.vmem [resolvable:$true] %s431
          %437 = dma.vmem_to_hbm [thread:$0]  %s432, 256, %s430, %s415, 128, 128, 8
        $region40: #{tpu_custom_call.1} parent=27 // pred_fallthru
          _
      $region28: #{tpu_custom_call.1} parent=5 // pred_fallthru
        _
      %p438 = scmp.le.s32.totalorder 2, %s17
      // Predicated region
      $region41: #{tpu_custom_call.1} parent=5 // pred_check
        %p439 = pneg %p438
      $region42: #{tpu_custom_call.1} parent=5 // pred_check_branch
        %441 = sbr.rel (%p439) target = $region44
      $region43: #{tpu_custom_call.1} parent=5 // pred_region
        %s442 = ssub.s32 %s17, 2
        // Predicated region
        $region45: #{tpu_custom_call.1} parent=43 // pred_check
          %p443 = pneg %p125
        $region46: #{tpu_custom_call.1} parent=43 // pred_check_branch
          %445 = sbr.rel (%p443) target = $region48
        $region47: #{tpu_custom_call.1} parent=43 // pred_region
          %s446 = sand.u32 %s110, 1
          %s447 = scalar_lea.sflag [#allocation4], %s446
          %s448 = sand.u32 %s110, 1
          %s449 = smul.addr %s448, 16
          %s450 = scalar_lea.vmem [#allocation7], %s449
          %451 = dma.done %s447, 256
        $region48: #{tpu_custom_call.1} parent=43 // pred_fallthru
          _
      $region44: #{tpu_custom_call.1} parent=5 // pred_fallthru
        _
    $region6: #{tpu_custom_call.1} parent=1 // loop_footer
      %s21 = sadd.s32 1, %s17
    $region7: #{tpu_custom_call.1} parent=1 // loop_footer_branch
      %16 = sbr.rel target = $region3
    $region8: #{tpu_custom_call.1} parent=1 // loop_exit
      _
    %452 = vsyncpa [#allocation3], 1
    %s453 = scalar_lea.sflag [#allocation3], 1
    %454 = vsyncpa %s453, 1
    %455 = vsyncpa [#allocation6], 1
    %s456 = scalar_lea.sflag [#allocation6], 1
    %457 = vsyncpa %s456, 1
    %458 = vsyncpa [#allocation4], 1
    %s459 = scalar_lea.sflag [#allocation4], 1
    %460 = vsyncpa %s459, 1

</llo_original>
